<compile_context>
chip_gen: v5e
topology: v5e:2x2
jax: 0.10.0
libtpu: 0.0.40
codegen_flags: <defaults>
</compile_context>

<pallas_src>
import jax
import jax.numpy as jnp
from jax.experimental import pallas as pl
from jax.experimental.pallas import tpu as pltpu

LANE = 128            # TPU vreg lane width: keep the fast axis 128-wide
DEFAULT_TILE_ROWS = 512   # 512 x 128 x 4B = 256 KiB per buffer -> near-roofline tiles


def copy_kernel(x_ref, o_ref):
    # Pure lane-dense tile copy; View has no arithmetic.
    o_ref[...] = x_ref[...]


def _resolve_size(numel, size):
    """Resolve a torch-style view size (supports a single -1 dimension)."""
    size = tuple(int(s) for s in size)
    if size.count(-1) > 1:
        raise ValueError("only one dimension can be inferred (-1)")
    if -1 in size:
        known = 1
        for s in size:
            if s != -1:
                known *= s
        if known == 0 or numel % known != 0:
            raise ValueError(f"cannot infer -1 for size {size} with {numel} elements")
        size = tuple(numel // known if s == -1 else s for s in size)
    total = 1
    for s in size:
        total *= s
    if total != numel:
        raise ValueError(f"view size {size} incompatible with {numel} elements")
    return size


def view(tensor, size, *, tile_rows=DEFAULT_TILE_ROWS):
    """Pallas implementation of `tensor.view(size)`.

    The data is copied through a lane-dense (rows, 128) tiled Pallas kernel;
    the target-shape reinterpretation itself is wrapper-side metadata (free).
    """
    numel = tensor.size
    out_size = _resolve_size(numel, size)
    flat = tensor.reshape(-1)  # metadata only; row-major order preserved

    if numel % LANE == 0:
        rows = numel // LANE
        x2d = flat.reshape(rows, LANE)

        # Pick a tile: full array if small, otherwise a multiple of 8 sublanes.
        tr = min(tile_rows, rows)
        if rows >= 8:
            tr = max(8, (tr // 8) * 8)
        else:
            tr = rows  # block equals full array dims -> always legal

        grid = (pl.cdiv(rows, tr),)
        out2d = pl.pallas_call(
            copy_kernel,
            out_shape=jax.ShapeDtypeStruct((rows, LANE), tensor.dtype),
            grid_spec=pltpu.PrefetchScalarGridSpec(
                num_scalar_prefetch=0,
                grid=grid,
                in_specs=[pl.BlockSpec((tr, LANE), lambda i: (i, 0))],
                out_specs=pl.BlockSpec((tr, LANE), lambda i: (i, 0)),
            ),
            compiler_params=pltpu.CompilerParams(
                # independent row-tiles -> megacore sharding on v7x
                dimension_semantics=("parallel",),
            ),
        )(x2d)
        out_flat = out2d.reshape(-1)
    else:
        # Fallback for element counts not divisible by 128: single full-array
        # block (block_shape == array shape satisfies the (8,128) rule).
        x2d = flat.reshape(1, numel)
        out2d = pl.pallas_call(
            copy_kernel,
            out_shape=jax.ShapeDtypeStruct((1, numel), tensor.dtype),
            grid_spec=pltpu.PrefetchScalarGridSpec(
                num_scalar_prefetch=0,
                grid=(1,),
                in_specs=[pl.BlockSpec((1, numel), lambda i: (0, 0))],
                out_specs=pl.BlockSpec((1, numel), lambda i: (0, 0)),
            ),
            compiler_params=pltpu.CompilerParams(
                dimension_semantics=("arbitrary",),
            ),
        )(x2d)
        out_flat = out2d.reshape(-1)

    return out_flat.reshape(out_size)


if __name__ == "__main__":
    key = jax.random.PRNGKey(0)
    x = jax.random.normal(key, (2, 4, 16, 16), jnp.float32)  # 2048 elements

    # View((2, -1)): (2, 4, 16, 16) -> (2, 1024)   [default large-tile path]
    out = jax.block_until_ready(view(x, (2, -1)))
    ref = x.reshape(2, 4 * 16 * 16)
    assert out.shape == ref.shape and out.dtype == ref.dtype
    assert bool(jnp.array_equal(out, ref)), "mismatch vs reference (2, -1)"

    # View((8, 16, 16)) with a small tile to exercise the multi-step,
    # pipelined + parallel grid path (rows=16, tile_rows=8 -> grid=(2,)).
    out2 = jax.block_until_ready(view(x, (8, 16, 16), tile_rows=8))
    assert bool(jnp.array_equal(out2, x.reshape(8, 16, 16))), "mismatch vs reference (8,16,16)"

    # View((-1,)): flatten completely.
    out3 = jax.block_until_ready(view(x, (-1,)))
    assert bool(jnp.array_equal(out3, x.reshape(-1))), "mismatch vs reference (-1,)"

    print("KERNEL_OK")
</pallas_src>

<mosaic_0001>
module attributes {stable_mosaic.version = 11 : i64} {
  func.func @copy_kernel(%arg0: i32, %arg1: memref<16x128xf32, #tpu.memory_space<vmem>>, %arg2: memref<16x128xf32, #tpu.memory_space<vmem>>) attributes {dimension_semantics = [#tpu.dimension_semantics<parallel>], iteration_bounds = array<i64: 1>, scalar_prefetch = 0 : i64, scratch_operands = 0 : i64, tpu.core_type = #tpu.core_type<tc>, window_params = [{transform_indices = @transform_0, window_bounds = array<i64: 16, 128>}, {transform_indices = @transform_1, window_bounds = array<i64: 16, 128>}]} {
    %c0 = arith.constant 0 : index
    %c0_0 = arith.constant 0 : index
    %0 = vector.load %arg1[%c0, %c0_0] : memref<16x128xf32, #tpu.memory_space<vmem>>, vector<16x128xf32>
    %c0_1 = arith.constant 0 : index
    %c0_2 = arith.constant 0 : index
    %1 = vector.load %arg2[%c0_1, %c0_2] : memref<16x128xf32, #tpu.memory_space<vmem>>, vector<16x128xf32>
    tpu.vector_store %arg2[%c0_1, %c0_2], %0 {strides = array<i32>} : memref<16x128xf32, #tpu.memory_space<vmem>>, vector<16x128xf32>,
    return
  }
  func.func @transform_0(%arg0: i32) -> (i32, i32) {
    %c0_i32 = arith.constant 0 : i32
    %c0_i32_0 = arith.constant 0 : i32
    return %arg0, %c0_i32 : i32, i32
  }
  func.func @transform_1(%arg0: i32) -> (i32, i32) {
    %c0_i32 = arith.constant 0 : i32
    %c0_i32_0 = arith.constant 0 : i32
    return %arg0, %c0_i32 : i32, i32
  }
}

</mosaic_0001>

<llo_original>
// kernel: tpu_custom_call.1
$region0: #{tpu_custom_call.1}
  #allocation0 [shape = 'u32[]', space=smem, size = 0x4, offset = 0x4, fixed_abs, tag = 'smem constant byte address 0x4 - core index']
  #allocation1 [shape = 'u32[72,128]{1,0:T(1,128)}', space=vmem, size = 0x9000, scoped, tag = 'internal scratch']
  %s0 = inlined_call_operand.hbm [shape: f32[16,128], index: 0, kind: input, shape index: {}]
  %s1 = inlined_call_operand.hbm [shape: f32[16,128], index: 1, kind: output, shape index: {}]
  %s2 = sld [smem:[#allocation0]]
  $region18: #{tpu_custom_call.1} parent=0
    _
  %s4 = ssub.s32 1, %s2
  %s5 = scalar_select 0, %s4, %s2
  $region1: #{tpu_custom_call.1} parent=0
    #allocation2 [shape = 'u8[8192]{0}', space=vmem, size = 0x2000, scoped, tag = 'input window, operand 0, single buffered']
    #allocation3 [shape = 's32[1]{0}', space=sflag, size = 0x4, scoped, tag = 'scoped memory for tpu_custom_call.1']
    #allocation4 [shape = 's32[1]{0}', space=sflag, size = 0x4, scoped, tag = 'scoped memory for tpu_custom_call.1']
    #allocation5 [shape = 'u8[8192]{0}', space=vmem, size = 0x2000, scoped, tag = 'output window, operand 0, single buffered']
    %6 = vsyncpa [#allocation3], 0
    %7 = vsyncpa [#allocation4], 0
    // Predicated region
    $region2: #{tpu_custom_call.1} parent=1 // pred_check
      _
    $region3: #{tpu_custom_call.1} parent=1 // pred_check_branch
      %9 = sbr.rel (0) target = $region5
    $region4: #{tpu_custom_call.1} parent=1 // pred_region
      %11 = vsyncadd [#allocation3], 0
      %s12 = sshll.u32 %s0, 4
      %s13 = int_to_ptr.hbm [resolvable:$true] %s12
      %s14 = sshll.u32 [#allocation2], 4
      %s15 = int_to_ptr.vmem [resolvable:$true] %s14
      %20 = dma.hbm_to_vmem [thread:$0]  %s13, 256, %s15, [#allocation3], 128, 128, 8
    $region5: #{tpu_custom_call.1} parent=1 // pred_fallthru
      _
    // Predicated region
    $region6: #{tpu_custom_call.1} parent=1 // pred_check
      _
    $region7: #{tpu_custom_call.1} parent=1 // pred_check_branch
      %22 = sbr.rel (0) target = $region9
    $region8: #{tpu_custom_call.1} parent=1 // pred_region
      %24 = dma.done [#allocation3], 256
    $region9: #{tpu_custom_call.1} parent=1 // pred_fallthru
      _
    %v25 = vld [vmem:[#allocation2] sm:$0xff]
    %v26 = vld [vmem:[#allocation2 + $0x8] sm:$0xff]
    %27 = vst [vmem:[#allocation5] sm:$0xff] %v25
    %28 = vst [vmem:[#allocation5 + $0x8] sm:$0xff] %v26
    // Predicated region
    $region10: #{tpu_custom_call.1} parent=1 // pred_check
      _
    $region11: #{tpu_custom_call.1} parent=1 // pred_check_branch
      %30 = sbr.rel (0) target = $region13
    $region12: #{tpu_custom_call.1} parent=1 // pred_region
      %32 = vsyncadd [#allocation4], 0
      %s33 = sshll.u32 [#allocation5], 4
      %s34 = int_to_ptr.vmem [resolvable:$true] %s33
      %s35 = sshll.u32 %s1, 4
      %s36 = int_to_ptr.hbm [resolvable:$true] %s35
      %41 = dma.vmem_to_hbm [thread:$0]  %s34, 256, %s36, [#allocation4], 128, 128, 8
    $region13: #{tpu_custom_call.1} parent=1 // pred_fallthru
      _
    // Predicated region
    $region14: #{tpu_custom_call.1} parent=1 // pred_check
      _
    $region15: #{tpu_custom_call.1} parent=1 // pred_check_branch
      %43 = sbr.rel (0) target = $region17
    $region16: #{tpu_custom_call.1} parent=1 // pred_region
      %45 = dma.done [#allocation4], 256
    $region17: #{tpu_custom_call.1} parent=1 // pred_fallthru
      _
    %46 = vsyncpa [#allocation3], 1
    %47 = vsyncpa [#allocation4], 1

</llo_original>
